<compile_context>
chip_gen: v7x
topology: tpu7x:2x2x1
jax: 0.10.0
libtpu: 0.0.40
codegen_flags: <defaults>
</compile_context>

<pallas_src>
import math
import numpy as np
import jax
import jax.numpy as jnp
from jax.experimental import pallas as pl
from jax.experimental.pallas import tpu as pltpu


_SMALL_N_MAX = 512  # below this the whole (K+1, N, N) bf16 stack fits VMEM comfortably


# ----------------------------------------------------------------------------
# Kernel A: small-N path.  Single invocation, k loop unrolled at trace time
# (K+1 == 3 and static -> all-static ref indices, full LLO visibility, and none
# of the ~0.35 us/step grid-pipeline overhead).
# ----------------------------------------------------------------------------
def _cheb_small_kernel(li_ref, lr_ref, xc_ref, wl_ref, ws_ref, b_ref, out_ref):
    # li = L.imag  (torch name: mul_L_real / L_norm_real)
    # lr = L.real  (torch name: mul_L_imag / L_norm_imag)
    xc = xc_ref[...]                                   # (N, 2*in_c)  bf16
    acc = jnp.zeros(out_ref.shape, jnp.float32)        # (N, 2*out_c) f32 accumulator
    kp1 = li_ref.shape[0]
    for k in range(kp1):                               # static unroll over Chebyshev order
        yl = jnp.dot(li_ref[k], xc, preferred_element_type=jnp.float32)  # [li@xr | li@xi]
        ys = jnp.dot(lr_ref[k], xc, preferred_element_type=jnp.float32)  # [lr@xr | lr@xi]
        # Lane-dense fused projection: [real_k | imag_k]
        acc = acc + jnp.dot(yl, wl_ref[k], preferred_element_type=jnp.float32)
        acc = acc + jnp.dot(ys, ws_ref[k], preferred_element_type=jnp.float32)
    out_ref[...] = acc + b_ref[...]                    # both biases added once


# ----------------------------------------------------------------------------
# Kernel B: row-tiled path for large graphs.
# grid = (row_tiles, K+1): rows 'parallel' (megacore sharding on v7x), k trailing
# 'arbitrary'; the output block index only depends on the row tile, so it stays
# resident across k and is used as the accumulator (init at k==0, bias at k==last,
# both guards keyed on the k axis only).
# ----------------------------------------------------------------------------
def _cheb_tiled_kernel(li_ref, lr_ref, xc_ref, wl_ref, ws_ref, b_ref, out_ref):
    k = pl.program_id(1)

    @pl.when(k == 0)
    def _():
        out_ref[...] = jnp.zeros_like(out_ref)

    xc = xc_ref[...]                                                    # (N, 2*in_c)
    yl = jnp.dot(li_ref[0], xc, preferred_element_type=jnp.float32)     # (tm, 2*in_c)
    ys = jnp.dot(lr_ref[0], xc, preferred_element_type=jnp.float32)
    out_ref[...] += (jnp.dot(yl, wl_ref[0], preferred_element_type=jnp.float32)
                     + jnp.dot(ys, ws_ref[0], preferred_element_type=jnp.float32))

    @pl.when(k == pl.num_programs(1) - 1)
    def _():
        out_ref[...] += b_ref[...]


# ----------------------------------------------------------------------------
# Wrapper
# ----------------------------------------------------------------------------
def _pick_row_tile(n, itemsize, l_buf_budget_bytes):
    """Row tile for the L stream: 2 operands x 2 pipeline buffers x tm*N*itemsize."""
    if n <= _SMALL_N_MAX:
        return n
    max_tm = max(8, l_buf_budget_bytes // (4 * n * itemsize))
    for tm in (512, 256, 128, 64, 32, 16, 8):
        if tm <= max_tm and n % tm == 0:
            return tm
    # TODO(synk): N not divisible by any multiple-of-8 tile; pad N upstream for
    # very large irregular graphs.  Fall back to full rows.
    return n


def cheb_conv_qin_2bias(l_real, l_imag, x_real, x_imag, weight,
                        bias_real, bias_imag, *,
                        compute_dtype=jnp.bfloat16, row_tile=None):
    """l_real/l_imag: (K+1, N, N); x_*: (N, in_c); weight: (K+1, in_c, out_c);
       bias_real/bias_imag: (1, out_c).  Returns (real, imag), each (N, out_c) f32."""
    kp1, n, _ = l_real.shape
    in_c = x_real.shape[1]
    out_c = weight.shape[2]

    # torch forward swaps names: L_norm_real = L_img, L_norm_imag = L_real.
    li = l_imag.astype(compute_dtype)     # plays the "mul_L_real" role
    lr = l_real.astype(compute_dtype)     # plays the "mul_L_imag" role

    # Concatenate real|imag features so the four L@X products become two wide matmuls.
    xc = jnp.concatenate([x_real, x_imag], axis=1).astype(compute_dtype)   # (N, 2*in_c)

    # Lane-dense combined projection weights (built once, wrapper-side):
    #   real_k = (li@xr)@W - (lr@xi)@W ,  imag_k = (lr@xr)@W + (li@xi)@W
    #   [real_k | imag_k] = (li@[xr|xi]) @ [[W,0],[0,W]] + (lr@[xr|xi]) @ [[0,W],[-W,0]]
    w32 = weight.astype(jnp.float32)
    z = jnp.zeros_like(w32)
    wl = jnp.concatenate([jnp.concatenate([w32, z], axis=2),
                          jnp.concatenate([z, w32], axis=2)], axis=1)      # (K+1, 2C, 2Co)
    ws = jnp.concatenate([jnp.concatenate([z, w32], axis=2),
                          jnp.concatenate([-w32, z], axis=2)], axis=1)     # (K+1, 2C, 2Co)
    bias_cat = jnp.concatenate([bias_real, bias_imag], axis=1).astype(jnp.float32)  # (1, 2Co)

    # Generation-aware VMEM budget (v7x has 64 MiB/TC vs 128 MiB on v5e/v6e).
    try:
        vmem_cap = pltpu.get_tpu_info().vmem_capacity_bytes
    except Exception:
        vmem_cap = 64 << 20   # conservative fallback (v7x per-core VMEM)
    itemsize = jnp.dtype(compute_dtype).itemsize
    l_budget = min(vmem_cap // 8, 8 << 20)

    tm = row_tile if row_tile is not None else _pick_row_tile(n, itemsize, l_budget)

    if tm >= n or n % tm != 0:
        # -------- small-N path: one invocation, no pipeline overhead --------
        out = pl.pallas_call(
            _cheb_small_kernel,
            out_shape=jax.ShapeDtypeStruct((n, 2 * out_c), jnp.float32),
            grid_spec=pltpu.PrefetchScalarGridSpec(
                num_scalar_prefetch=0,
                grid=(1,),
                in_specs=[
                    pl.BlockSpec((kp1, n, n), lambda i: (0, 0, 0)),           # L.imag stack
                    pl.BlockSpec((kp1, n, n), lambda i: (0, 0, 0)),           # L.real stack
                    pl.BlockSpec((n, 2 * in_c), lambda i: (0, 0)),            # [Xr | Xi]
                    pl.BlockSpec((kp1, 2 * in_c, 2 * out_c), lambda i: (0, 0, 0)),
                    pl.BlockSpec((kp1, 2 * in_c, 2 * out_c), lambda i: (0, 0, 0)),
                    pl.BlockSpec((1, 2 * out_c), lambda i: (0, 0)),           # [b_r | b_i]
                ],
                out_specs=pl.BlockSpec((n, 2 * out_c), lambda i: (0, 0)),
            ),
            compiler_params=pltpu.CompilerParams(
                dimension_semantics=("arbitrary",)),
        )(li, lr, xc, wl, ws, bias_cat)
    else:
        # -------- row-tiled path: rows parallel, k sequential accumulator --------
        r_tiles = n // tm
        out = pl.pallas_call(
            _cheb_tiled_kernel,
            out_shape=jax.ShapeDtypeStruct((n, 2 * out_c), jnp.float32),
            grid_spec=pltpu.PrefetchScalarGridSpec(
                num_scalar_prefetch=0,
                grid=(r_tiles, kp1),
                in_specs=[
                    pl.BlockSpec((1, tm, n), lambda r, k: (k, r, 0)),         # L.imag tile
                    pl.BlockSpec((1, tm, n), lambda r, k: (k, r, 0)),         # L.real tile
                    pl.BlockSpec((n, 2 * in_c), lambda r, k: (0, 0)),         # X (resident)
                    pl.BlockSpec((1, 2 * in_c, 2 * out_c), lambda r, k: (k, 0, 0)),
                    pl.BlockSpec((1, 2 * in_c, 2 * out_c), lambda r, k: (k, 0, 0)),
                    # constant block index -> Pallas DMAs the bias only once
                    pl.BlockSpec((1, 2 * out_c), lambda r, k: (0, 0)),
                ],
                out_specs=pl.BlockSpec((tm, 2 * out_c), lambda r, k: (r, 0)),
            ),
            compiler_params=pltpu.CompilerParams(
                dimension_semantics=("parallel", "arbitrary"),
                vmem_limit_bytes=int(min(vmem_cap // 2, 32 << 20))),
        )(li, lr, xc, wl, ws, bias_cat)

    return out[:, :out_c], out[:, out_c:]


# ----------------------------------------------------------------------------
# Host-side glue: dense magnetic Hermitian Laplacian + Chebyshev stack (numpy).
# ----------------------------------------------------------------------------
def build_cheb_laplacians(edges, edge_weight, num_nodes, q, k_order=2, max_eigen=2.0):
    f_node, e_node = edges[0], edges[1]
    a = np.zeros((num_nodes, num_nodes), dtype=np.float64)
    for s, d, w in zip(f_node, e_node, edge_weight):
        a[s, d] += w

    a_sym = 0.5 * (a + a.T)
    deg = a_sym.sum(axis=1)
    d_inv_sqrt = np.where(deg > 0, 1.0 / np.sqrt(np.maximum(deg, 1e-12)), 0.0)
    theta = 2.0 * np.pi * q * (a - a.T)
    phase = np.exp(1j * theta)

    a_norm = (d_inv_sqrt[:, None] * a_sym * d_inv_sqrt[None, :]) * phase
    lap = np.eye(num_nodes) - a_norm                       # normalized Hermitian Laplacian
    lap = (2.0 / max_eigen) * lap - np.eye(num_nodes)      # rescale to [-1, 1]

    cheb = [np.eye(num_nodes, dtype=np.complex128), lap]
    for _ in range(2, k_order + 1):
        cheb.append(2.0 * lap @ cheb[-1] - cheb[-2])
    cheb = cheb[: k_order + 1]

    l_real = np.stack([c.real for c in cheb]).astype(np.float32)
    l_imag = np.stack([c.imag for c in cheb]).astype(np.float32)
    return jnp.asarray(l_real), jnp.asarray(l_imag)


# ----------------------------------------------------------------------------
# Main: deterministic small-shape examples + checks against the module math.
# ----------------------------------------------------------------------------
if __name__ == "__main__":
    key = jax.random.PRNGKey(0)

    def make_inputs(k, n, in_c, out_c, k_order, q, n_edges):
        k_xr, k_xi, k_src, k_dst, k_ew, k_w, k_br, k_bi = jax.random.split(k, 8)
        x_real = jax.random.normal(k_xr, (n, in_c), dtype=jnp.float32)
        x_imag = jax.random.normal(k_xi, (n, in_c), dtype=jnp.float32)
        src = np.asarray(jax.random.randint(k_src, (n_edges,), 0, n))
        dst = np.asarray(jax.random.randint(k_dst, (n_edges,), 0, n))
        ew = np.asarray(jax.random.uniform(k_ew, (n_edges,), minval=0.1, maxval=1.0))
        edges = np.stack([src, dst])
        stdv = 1.0 / math.sqrt(out_c)
        weight = jax.random.uniform(k_w, (k_order + 1, in_c, out_c),
                                    minval=-stdv, maxval=stdv, dtype=jnp.float32)
        # Module zero-inits biasreal/biasimag; use small random values so the
        # two separate bias adds are actually exercised by the test.
        bias_real = 0.1 * jax.random.normal(k_br, (1, out_c), dtype=jnp.float32)
        bias_imag = 0.1 * jax.random.normal(k_bi, (1, out_c), dtype=jnp.float32)
        l_real, l_imag = build_cheb_laplacians(edges, ew, n, q, k_order=k_order)
        return l_real, l_imag, x_real, x_imag, weight, bias_real, bias_imag

    def ref_forward_np(l_real, l_imag, x_real, x_imag, weight, b_r, b_i):
        # float64 numpy reference mirroring the torch forward (including the
        # L_norm_real = L_img / L_norm_imag = L_real swap and the two biases).
        l_real = np.asarray(l_real, np.float64)
        l_imag = np.asarray(l_imag, np.float64)
        xr = np.asarray(x_real, np.float64)
        xi = np.asarray(x_imag, np.float64)
        w = np.asarray(weight, np.float64)
        real = np.zeros((xr.shape[0], w.shape[2]))
        imag = np.zeros_like(real)
        for i in range(w.shape[0]):
            mul_L_real = l_imag[i]     # L_norm_real = L_img
            mul_L_imag = l_real[i]     # L_norm_imag = L_real
            real += (mul_L_real @ xr) @ w[i] + (-(mul_L_imag @ xi)) @ w[i]
            imag += (mul_L_imag @ xr) @ w[i] + (mul_L_real @ xi) @ w[i]
        return real + np.asarray(b_r, np.float64), imag + np.asarray(b_i, np.float64)

    def check(name, inputs, row_tile=None):
        l_real, l_imag, x_real, x_imag, weight, b_r, b_i = inputs
        real, imag = cheb_conv_qin_2bias(l_real, l_imag, x_real, x_imag,
                                         weight, b_r, b_i, row_tile=row_tile)
        jax.block_until_ready((real, imag))
        real = np.asarray(real)
        imag = np.asarray(imag)

        # Reference from the same bf16-rounded streamed operands (kernel accumulates f32).
        rnd = lambda a: np.asarray(a.astype(jnp.bfloat16).astype(jnp.float32))
        ref_r, ref_i = ref_forward_np(rnd(l_real), rnd(l_imag), rnd(x_real),
                                      rnd(x_imag), weight, b_r, b_i)
        assert np.allclose(real, ref_r, atol=5e-2, rtol=5e-2), f"{name}: real mismatch"
        assert np.allclose(imag, ref_i, atol=5e-2, rtol=5e-2), f"{name}: imag mismatch"

        # Loose sanity check against the full-f32 module math (bf16 input rounding only).
        ref_r32, ref_i32 = ref_forward_np(l_real, l_imag, x_real, x_imag, weight, b_r, b_i)
        assert np.allclose(real, ref_r32, atol=1.5e-1, rtol=1.5e-1), f"{name}: real f32 drift"
        assert np.allclose(imag, ref_i32, atol=1.5e-1, rtol=1.5e-1), f"{name}: imag f32 drift"

    k1, k2 = jax.random.split(key)
    # Test 1: small graph -> single-invocation (no-grid) path.
    check("small", make_inputs(k1, n=16, in_c=4, out_c=8, k_order=2, q=0.25, n_edges=40))
    # Test 2: larger graph -> row-tiled, megacore-parallel path (forced via row_tile).
    check("tiled", make_inputs(k2, n=256, in_c=4, out_c=8, k_order=2, q=0.25, n_edges=1024),
          row_tile=128)

    print("KERNEL_OK")
</pallas_src>

<mosaic_0001>
module attributes {stable_mosaic.version = 11 : i64} {
  func.func @_cheb_small_kernel(%arg0: i32, %arg1: memref<3x16x16xbf16, #tpu.memory_space<vmem>>, %arg2: memref<3x16x16xbf16, #tpu.memory_space<vmem>>, %arg3: memref<16x8xbf16, #tpu.memory_space<vmem>>, %arg4: memref<3x8x16xf32, #tpu.memory_space<vmem>>, %arg5: memref<3x8x16xf32, #tpu.memory_space<vmem>>, %arg6: memref<1x16xf32, #tpu.memory_space<vmem>>, %arg7: memref<16x16xf32, #tpu.memory_space<vmem>>) attributes {dimension_semantics = [#tpu.dimension_semantics<arbitrary>], iteration_bounds = array<i64: 1>, scalar_prefetch = 0 : i64, scratch_operands = 0 : i64, tpu.core_type = #tpu.core_type<tc>, window_params = [{pipeline_mode = #tpu.pipeline_mode<synchronous>, transform_indices = @transform_0, window_bounds = array<i64: 3, 16, 16>}, {pipeline_mode = #tpu.pipeline_mode<synchronous>, transform_indices = @transform_1, window_bounds = array<i64: 3, 16, 16>}, {pipeline_mode = #tpu.pipeline_mode<synchronous>, transform_indices = @transform_2, window_bounds = array<i64: 16, 8>}, {pipeline_mode = #tpu.pipeline_mode<synchronous>, transform_indices = @transform_3, window_bounds = array<i64: 3, 8, 16>}, {pipeline_mode = #tpu.pipeline_mode<synchronous>, transform_indices = @transform_4, window_bounds = array<i64: 3, 8, 16>}, {pipeline_mode = #tpu.pipeline_mode<synchronous>, transform_indices = @transform_5, window_bounds = array<i64: 1, 16>}, {pipeline_mode = #tpu.pipeline_mode<synchronous>, transform_indices = @transform_6, window_bounds = array<i64: 16, 16>}]} {
    %c0 = arith.constant 0 : index
    %c0_0 = arith.constant 0 : index
    %0 = vector.load %arg3[%c0, %c0_0] : memref<16x8xbf16, #tpu.memory_space<vmem>>, vector<16x8xbf16>
    %cst = arith.constant 0.000000e+00 : f32
    %1 = vector.broadcast %cst : f32 to vector<16x16xf32>
    %c0_1 = arith.constant 0 : index
    %c0_2 = arith.constant 0 : index
    %c0_3 = arith.constant 0 : index
    %2 = vector.load %arg1[%c0_1, %c0_2, %c0_3] : memref<3x16x16xbf16, #tpu.memory_space<vmem>>, vector<1x16x16xbf16>
    %3 = vector.shape_cast %2 : vector<1x16x16xbf16> to vector<16x16xbf16>
    %cst_4 = arith.constant dense<0.000000e+00> : vector<16x8xf32>
    %4 = tpu.matmul %3, %0, %cst_4 {dimension_numbers = #tpu.dot_dimension_numbers<[1], [0], [0], [1], [0, 0, 1, 1], [], []>} : vector<16x16xbf16>, vector<16x8xbf16>, vector<16x8xf32> -> vector<16x8xf32>
    %c0_5 = arith.constant 0 : index
    %c0_6 = arith.constant 0 : index
    %c0_7 = arith.constant 0 : index
    %5 = vector.load %arg2[%c0_5, %c0_6, %c0_7] : memref<3x16x16xbf16, #tpu.memory_space<vmem>>, vector<1x16x16xbf16>
    %6 = vector.shape_cast %5 : vector<1x16x16xbf16> to vector<16x16xbf16>
    %cst_8 = arith.constant dense<0.000000e+00> : vector<16x8xf32>
    %7 = tpu.matmul %6, %0, %cst_8 {dimension_numbers = #tpu.dot_dimension_numbers<[1], [0], [0], [1], [0, 0, 1, 1], [], []>} : vector<16x16xbf16>, vector<16x8xbf16>, vector<16x8xf32> -> vector<16x8xf32>
    %c0_9 = arith.constant 0 : index
    %c0_10 = arith.constant 0 : index
    %c0_11 = arith.constant 0 : index
    %8 = vector.load %arg4[%c0_9, %c0_10, %c0_11] : memref<3x8x16xf32, #tpu.memory_space<vmem>>, vector<1x8x16xf32>
    %9 = vector.shape_cast %8 : vector<1x8x16xf32> to vector<8x16xf32>
    %cst_12 = arith.constant dense<0.000000e+00> : vector<16x16xf32>
    %10 = tpu.matmul %4, %9, %cst_12 {dimension_numbers = #tpu.dot_dimension_numbers<[1], [0], [0], [1], [0, 0, 1, 1], [], []>} : vector<16x8xf32>, vector<8x16xf32>, vector<16x16xf32> -> vector<16x16xf32>
    %11 = arith.addf %1, %10 : vector<16x16xf32>
    %c0_13 = arith.constant 0 : index
    %c0_14 = arith.constant 0 : index
    %c0_15 = arith.constant 0 : index
    %12 = vector.load %arg5[%c0_13, %c0_14, %c0_15] : memref<3x8x16xf32, #tpu.memory_space<vmem>>, vector<1x8x16xf32>
    %13 = vector.shape_cast %12 : vector<1x8x16xf32> to vector<8x16xf32>
    %cst_16 = arith.constant dense<0.000000e+00> : vector<16x16xf32>
    %14 = tpu.matmul %7, %13, %cst_16 {dimension_numbers = #tpu.dot_dimension_numbers<[1], [0], [0], [1], [0, 0, 1, 1], [], []>} : vector<16x8xf32>, vector<8x16xf32>, vector<16x16xf32> -> vector<16x16xf32>
    %15 = arith.addf %11, %14 : vector<16x16xf32>
    %c1 = arith.constant 1 : index
    %c0_17 = arith.constant 0 : index
    %c0_18 = arith.constant 0 : index
    %16 = vector.load %arg1[%c1, %c0_17, %c0_18] : memref<3x16x16xbf16, #tpu.memory_space<vmem>>, vector<1x16x16xbf16>
    %17 = vector.shape_cast %16 : vector<1x16x16xbf16> to vector<16x16xbf16>
    %cst_19 = arith.constant dense<0.000000e+00> : vector<16x8xf32>
    %18 = tpu.matmul %17, %0, %cst_19 {dimension_numbers = #tpu.dot_dimension_numbers<[1], [0], [0], [1], [0, 0, 1, 1], [], []>} : vector<16x16xbf16>, vector<16x8xbf16>, vector<16x8xf32> -> vector<16x8xf32>
    %c1_20 = arith.constant 1 : index
    %c0_21 = arith.constant 0 : index
    %c0_22 = arith.constant 0 : index
    %19 = vector.load %arg2[%c1_20, %c0_21, %c0_22] : memref<3x16x16xbf16, #tpu.memory_space<vmem>>, vector<1x16x16xbf16>
    %20 = vector.shape_cast %19 : vector<1x16x16xbf16> to vector<16x16xbf16>
    %cst_23 = arith.constant dense<0.000000e+00> : vector<16x8xf32>
    %21 = tpu.matmul %20, %0, %cst_23 {dimension_numbers = #tpu.dot_dimension_numbers<[1], [0], [0], [1], [0, 0, 1, 1], [], []>} : vector<16x16xbf16>, vector<16x8xbf16>, vector<16x8xf32> -> vector<16x8xf32>
    %c1_24 = arith.constant 1 : index
    %c0_25 = arith.constant 0 : index
    %c0_26 = arith.constant 0 : index
    %22 = vector.load %arg4[%c1_24, %c0_25, %c0_26] : memref<3x8x16xf32, #tpu.memory_space<vmem>>, vector<1x8x16xf32>
    %23 = vector.shape_cast %22 : vector<1x8x16xf32> to vector<8x16xf32>
    %cst_27 = arith.constant dense<0.000000e+00> : vector<16x16xf32>
    %24 = tpu.matmul %18, %23, %cst_27 {dimension_numbers = #tpu.dot_dimension_numbers<[1], [0], [0], [1], [0, 0, 1, 1], [], []>} : vector<16x8xf32>, vector<8x16xf32>, vector<16x16xf32> -> vector<16x16xf32>
    %25 = arith.addf %15, %24 : vector<16x16xf32>
    %c1_28 = arith.constant 1 : index
    %c0_29 = arith.constant 0 : index
    %c0_30 = arith.constant 0 : index
    %26 = vector.load %arg5[%c1_28, %c0_29, %c0_30] : memref<3x8x16xf32, #tpu.memory_space<vmem>>, vector<1x8x16xf32>
    %27 = vector.shape_cast %26 : vector<1x8x16xf32> to vector<8x16xf32>
    %cst_31 = arith.constant dense<0.000000e+00> : vector<16x16xf32>
    %28 = tpu.matmul %21, %27, %cst_31 {dimension_numbers = #tpu.dot_dimension_numbers<[1], [0], [0], [1], [0, 0, 1, 1], [], []>} : vector<16x8xf32>, vector<8x16xf32>, vector<16x16xf32> -> vector<16x16xf32>
    %29 = arith.addf %25, %28 : vector<16x16xf32>
    %c2 = arith.constant 2 : index
    %c0_32 = arith.constant 0 : index
    %c0_33 = arith.constant 0 : index
    %30 = vector.load %arg1[%c2, %c0_32, %c0_33] : memref<3x16x16xbf16, #tpu.memory_space<vmem>>, vector<1x16x16xbf16>
    %31 = vector.shape_cast %30 : vector<1x16x16xbf16> to vector<16x16xbf16>
    %cst_34 = arith.constant dense<0.000000e+00> : vector<16x8xf32>
    %32 = tpu.matmul %31, %0, %cst_34 {dimension_numbers = #tpu.dot_dimension_numbers<[1], [0], [0], [1], [0, 0, 1, 1], [], []>} : vector<16x16xbf16>, vector<16x8xbf16>, vector<16x8xf32> -> vector<16x8xf32>
    %c2_35 = arith.constant 2 : index
    %c0_36 = arith.constant 0 : index
    %c0_37 = arith.constant 0 : index
    %33 = vector.load %arg2[%c2_35, %c0_36, %c0_37] : memref<3x16x16xbf16, #tpu.memory_space<vmem>>, vector<1x16x16xbf16>
    %34 = vector.shape_cast %33 : vector<1x16x16xbf16> to vector<16x16xbf16>
    %cst_38 = arith.constant dense<0.000000e+00> : vector<16x8xf32>
    %35 = tpu.matmul %34, %0, %cst_38 {dimension_numbers = #tpu.dot_dimension_numbers<[1], [0], [0], [1], [0, 0, 1, 1], [], []>} : vector<16x16xbf16>, vector<16x8xbf16>, vector<16x8xf32> -> vector<16x8xf32>
    %c2_39 = arith.constant 2 : index
    %c0_40 = arith.constant 0 : index
    %c0_41 = arith.constant 0 : index
    %36 = vector.load %arg4[%c2_39, %c0_40, %c0_41] : memref<3x8x16xf32, #tpu.memory_space<vmem>>, vector<1x8x16xf32>
    %37 = vector.shape_cast %36 : vector<1x8x16xf32> to vector<8x16xf32>
    %cst_42 = arith.constant dense<0.000000e+00> : vector<16x16xf32>
    %38 = tpu.matmul %32, %37, %cst_42 {dimension_numbers = #tpu.dot_dimension_numbers<[1], [0], [0], [1], [0, 0, 1, 1], [], []>} : vector<16x8xf32>, vector<8x16xf32>, vector<16x16xf32> -> vector<16x16xf32>
    %39 = arith.addf %29, %38 : vector<16x16xf32>
    %c2_43 = arith.constant 2 : index
    %c0_44 = arith.constant 0 : index
    %c0_45 = arith.constant 0 : index
    %40 = vector.load %arg5[%c2_43, %c0_44, %c0_45] : memref<3x8x16xf32, #tpu.memory_space<vmem>>, vector<1x8x16xf32>
    %41 = vector.shape_cast %40 : vector<1x8x16xf32> to vector<8x16xf32>
    %cst_46 = arith.constant dense<0.000000e+00> : vector<16x16xf32>
    %42 = tpu.matmul %35, %41, %cst_46 {dimension_numbers = #tpu.dot_dimension_numbers<[1], [0], [0], [1], [0, 0, 1, 1], [], []>} : vector<16x8xf32>, vector<8x16xf32>, vector<16x16xf32> -> vector<16x16xf32>
    %43 = arith.addf %39, %42 : vector<16x16xf32>
    %c0_47 = arith.constant 0 : index
    %c0_48 = arith.constant 0 : index
    %44 = vector.load %arg6[%c0_47, %c0_48] : memref<1x16xf32, #tpu.memory_space<vmem>>, vector<1x16xf32>
    %45 = vector.broadcast %44 : vector<1x16xf32> to vector<16x16xf32>
    %46 = arith.addf %43, %45 : vector<16x16xf32>
    %c0_49 = arith.constant 0 : index
    %c0_50 = arith.constant 0 : index
    %47 = vector.load %arg7[%c0_49, %c0_50] : memref<16x16xf32, #tpu.memory_space<vmem>>, vector<16x16xf32>
    tpu.vector_store %arg7[%c0_49, %c0_50], %46 {strides = array<i32>} : memref<16x16xf32, #tpu.memory_space<vmem>>, vector<16x16xf32>,
    return
  }
  func.func @transform_0(%arg0: i32) -> (i32, i32, i32) {
    %c0_i32 = arith.constant 0 : i32
    %c0_i32_0 = arith.constant 0 : i32
    %c0_i32_1 = arith.constant 0 : i32
    %c0_i32_2 = arith.constant 0 : i32
    return %c0_i32, %c0_i32_0, %c0_i32_1 : i32, i32, i32
  }
  func.func @transform_1(%arg0: i32) -> (i32, i32, i32) {
    %c0_i32 = arith.constant 0 : i32
    %c0_i32_0 = arith.constant 0 : i32
    %c0_i32_1 = arith.constant 0 : i32
    %c0_i32_2 = arith.constant 0 : i32
    return %c0_i32, %c0_i32_0, %c0_i32_1 : i32, i32, i32
  }
  func.func @transform_2(%arg0: i32) -> (i32, i32) {
    %c0_i32 = arith.constant 0 : i32
    %c0_i32_0 = arith.constant 0 : i32
    %c0_i32_1 = arith.constant 0 : i32
    return %c0_i32, %c0_i32_0 : i32, i32
  }
  func.func @transform_3(%arg0: i32) -> (i32, i32, i32) {
    %c0_i32 = arith.constant 0 : i32
    %c0_i32_0 = arith.constant 0 : i32
    %c0_i32_1 = arith.constant 0 : i32
    %c0_i32_2 = arith.constant 0 : i32
    return %c0_i32, %c0_i32_0, %c0_i32_1 : i32, i32, i32
  }
  func.func @transform_4(%arg0: i32) -> (i32, i32, i32) {
    %c0_i32 = arith.constant 0 : i32
    %c0_i32_0 = arith.constant 0 : i32
    %c0_i32_1 = arith.constant 0 : i32
    %c0_i32_2 = arith.constant 0 : i32
    return %c0_i32, %c0_i32_0, %c0_i32_1 : i32, i32, i32
  }
  func.func @transform_5(%arg0: i32) -> (i32, i32) {
    %c0_i32 = arith.constant 0 : i32
    %c0_i32_0 = arith.constant 0 : i32
    %c0_i32_1 = arith.constant 0 : i32
    return %c0_i32, %c0_i32_0 : i32, i32
  }
  func.func @transform_6(%arg0: i32) -> (i32, i32) {
    %c0_i32 = arith.constant 0 : i32
    %c0_i32_0 = arith.constant 0 : i32
    %c0_i32_1 = arith.constant 0 : i32
    return %c0_i32, %c0_i32_0 : i32, i32
  }
}

</mosaic_0001>

<llo_original>
// kernel: tpu_custom_call.1
$region0: #{tpu_custom_call.1}
  #allocation0 [shape = 'u32[]', space=smem, size = 0x4, offset = 0x4, fixed_abs, tag = 'smem constant byte address 0x4 - core index']
  #allocation1 [shape = 'u32[144,128]{1,0:T(1,128)}', space=vmem, size = 0x12000, scoped, tag = 'internal scratch']
  %s0 = inlined_call_operand.hbm [shape: bf16[3,16,16], index: 0, kind: input, shape index: {}]
  %s1 = inlined_call_operand.hbm [shape: bf16[3,16,16], index: 1, kind: input, shape index: {}]
  %s2 = inlined_call_operand.vmem [shape: bf16[16,8], index: 2, kind: input, shape index: {}]
  %s3 = inlined_call_operand.hbm [shape: f32[3,8,16], index: 3, kind: input, shape index: {}]
  %s4 = inlined_call_operand.vmem [shape: f32[3,8,16], index: 4, kind: input, shape index: {}]
  %s5 = inlined_call_operand.vmem [shape: f32[1,16], index: 5, kind: input, shape index: {}]
  %s6 = inlined_call_operand.hbm [shape: f32[16,16], index: 6, kind: output, shape index: {}]
  %s7 = sld [smem:[#allocation0]]
  $region46: #{tpu_custom_call.1} parent=0
    _
  %s9 = ssub.s32 1, %s7
  %s10 = scalar_select 0, %s9, %s7
  $region1: #{tpu_custom_call.1} parent=0
    #allocation2 [shape = 'u8[12288]{0}', space=vmem, size = 0x3000, scoped, tag = 'input window, operand 0, single buffered']
    #allocation3 [shape = 's32[1]{0}', space=sflag, size = 0x4, scoped, tag = 'scoped memory for tpu_custom_call.1']
    #allocation4 [shape = 's32[1]{0}', space=sflag, size = 0x4, scoped, tag = 'scoped memory for tpu_custom_call.1']
    #allocation5 [shape = 'u8[12288]{0}', space=vmem, size = 0x3000, scoped, tag = 'input window, operand 1, single buffered']
    #allocation6 [shape = 's32[1]{0}', space=sflag, size = 0x4, scoped, tag = 'scoped memory for tpu_custom_call.1']
    #allocation7 [shape = 'u8[12288]{0}', space=vmem, size = 0x3000, scoped, tag = 'input window, operand 3, single buffered']
    #allocation8 [shape = 'u8[8192]{0}', space=vmem, size = 0x2000, scoped, tag = 'output window, operand 0, single buffered']
    %11 = vsyncpa [#allocation3], 0
    %12 = vsyncpa [#allocation6], 0
    %13 = vsyncpa [#allocation4], 0
    // Predicated region
    $region2: #{tpu_custom_call.1} parent=1 // pred_check
      _
    $region3: #{tpu_custom_call.1} parent=1 // pred_check_branch
      %15 = sbr.rel (0) target = $region5
    $region4: #{tpu_custom_call.1} parent=1 // pred_region
      %s17 = ssub.s32 384, 384
      %18 = vsyncadd [#allocation3], %s17
      %s19 = sshll.u32 [#allocation2], 4
      %s20 = int_to_ptr.vmem [resolvable:$true] %s19
      %25 = dma.hbm_to_vmem [thread:$0]  %s0, 384, %s20, [#allocation3], 64, 64, 4
    $region5: #{tpu_custom_call.1} parent=1 // pred_fallthru
      _
    // Predicated region
    $region6: #{tpu_custom_call.1} parent=1 // pred_check
      _
    $region7: #{tpu_custom_call.1} parent=1 // pred_check_branch
      %27 = sbr.rel (0) target = $region9
    $region8: #{tpu_custom_call.1} parent=1 // pred_region
      %s29 = ssub.s32 384, 384
      %30 = vsyncadd [#allocation6], %s29
      %s31 = sshll.u32 [#allocation5], 4
      %s32 = int_to_ptr.vmem [resolvable:$true] %s31
      %37 = dma.hbm_to_vmem [thread:$0]  %s1, 384, %s32, [#allocation6], 64, 64, 4
    $region9: #{tpu_custom_call.1} parent=1 // pred_fallthru
      _
    // Predicated region
    $region10: #{tpu_custom_call.1} parent=1 // pred_check
      _
    $region11: #{tpu_custom_call.1} parent=1 // pred_check_branch
      %39 = sbr.rel (0) target = $region13
    $region12: #{tpu_custom_call.1} parent=1 // pred_region
      _
    $region13: #{tpu_custom_call.1} parent=1 // pred_fallthru
      _
    // Predicated region
    $region14: #{tpu_custom_call.1} parent=1 // pred_check
      _
    $region15: #{tpu_custom_call.1} parent=1 // pred_check_branch
      %41 = sbr.rel (0) target = $region17
    $region16: #{tpu_custom_call.1} parent=1 // pred_region
      %s43 = ssub.s32 384, 384
      %44 = vsyncadd [#allocation6], %s43
      %s45 = sshll.u32 [#allocation7], 4
      %s46 = int_to_ptr.vmem [resolvable:$true] %s45
      %51 = dma.hbm_to_vmem [thread:$0]  %s3, 384, %s46, [#allocation6], 128, 128, 8
    $region17: #{tpu_custom_call.1} parent=1 // pred_fallthru
      _
    // Predicated region
    $region18: #{tpu_custom_call.1} parent=1 // pred_check
      _
    $region19: #{tpu_custom_call.1} parent=1 // pred_check_branch
      %53 = sbr.rel (0) target = $region21
    $region20: #{tpu_custom_call.1} parent=1 // pred_region
      _
    $region21: #{tpu_custom_call.1} parent=1 // pred_fallthru
      _
    // Predicated region
    $region22: #{tpu_custom_call.1} parent=1 // pred_check
      _
    $region23: #{tpu_custom_call.1} parent=1 // pred_check_branch
      %55 = sbr.rel (0) target = $region25
    $region24: #{tpu_custom_call.1} parent=1 // pred_region
      _
    $region25: #{tpu_custom_call.1} parent=1 // pred_fallthru
      _
    // Predicated region
    $region26: #{tpu_custom_call.1} parent=1 // pred_check
      _
    $region27: #{tpu_custom_call.1} parent=1 // pred_check_branch
      %57 = sbr.rel (0) target = $region29
    $region28: #{tpu_custom_call.1} parent=1 // pred_region
      %58 = dma.done [#allocation3], 384
    $region29: #{tpu_custom_call.1} parent=1 // pred_fallthru
      _
    // Predicated region
    $region30: #{tpu_custom_call.1} parent=1 // pred_check
      _
    $region31: #{tpu_custom_call.1} parent=1 // pred_check_branch
      %60 = sbr.rel (0) target = $region33
    $region32: #{tpu_custom_call.1} parent=1 // pred_region
      %61 = dma.done [#allocation6], 384
    $region33: #{tpu_custom_call.1} parent=1 // pred_fallthru
      _
    // Predicated region
    $region34: #{tpu_custom_call.1} parent=1 // pred_check
      _
    $region35: #{tpu_custom_call.1} parent=1 // pred_check_branch
      %63 = sbr.rel (0) target = $region37
    $region36: #{tpu_custom_call.1} parent=1 // pred_region
      %64 = dma.done [#allocation6], 384
    $region37: #{tpu_custom_call.1} parent=1 // pred_fallthru
      _
    %v66 = vld [vmem:[%s2] sm:$0xf]
    %v67 = vld [vmem:[%s2 + $0x4] sm:$0xf]
    %v68 = vld [vmem:[#allocation2] sm:$0xf]
    %v69 = vld [vmem:[#allocation2 + $0x4] sm:$0xf]
    %v72 = vunpack.c.l.b16 %v68
    %v73 = vunpack.c.l.b16 %v69
    %v74 = vpack.c.b16 %v73, %v72
    %v77 = vunpack.c.l.b16 %v66
    %v78 = vunpack.c.l.b16 %v67
    %v79 = vpack.c.b16 %v78, %v77
    %vm81 = vcmask 130048
    %v83 = vsel %vm81, %v74, 0
    %85 = vmatprep.subr.bf16.mxu0 0
    %86 = vmatpush1.bf16.msra.mxu0 %v79
    %87 = vmatprep.subr.bf16.mxu0 0
    %88 = vmatpush1.bf16.msra.mxu0 0
    %89 = vmatprep.subr.bf16.mxu0 0
    %90 = vmatpush1.bf16.msra.mxu0 0
    %91 = vmatprep.subr.bf16.mxu0 0
    %92 = vmatpush1.bf16.msra.mxu0 0
    %93 = vmatprep.subr.bf16.mxu0 0
    %94 = vmatpush1.bf16.msra.mxu0 0
    %95 = vmatprep.subr.bf16.mxu0 0
    %96 = vmatpush1.bf16.msra.mxu0 0
    %97 = vmatprep.subr.bf16.mxu0 0
    %98 = vmatpush1.bf16.msra.mxu0 0
    %99 = vmatprep.subr.bf16.mxu0 0
    %100 = vmatpush1.bf16.msra.mxu0 0
    %101 = vmatprep.subr.bf16.mxu0 0
    %102 = vmatpush1.bf16.msra.mxu0 0
    %103 = vmatprep.subr.bf16.mxu0 0
    %104 = vmatpush1.bf16.msra.mxu0 0
    %105 = vmatprep.subr.bf16.mxu0 0
    %106 = vmatpush1.bf16.msra.mxu0 0
    %107 = vmatprep.subr.bf16.mxu0 0
    %108 = vmatpush1.bf16.msra.mxu0 0
    %109 = vmatprep.subr.bf16.mxu0 0
    %110 = vmatpush1.bf16.msra.mxu0 0
    %111 = vmatprep.subr.bf16.mxu0 0
    %112 = vmatpush1.bf16.msra.mxu0 0
    %113 = vmatprep.subr.bf16.mxu0 0
    %114 = vmatpush1.bf16.msra.mxu0 0
    %115 = vmatprep.subr.bf16.mxu0 0
    %116 = vmatpush1.bf16.msra.mxu0 0
    %117 = vmatprep.mubr.bf16.mxu0 0
    %118 = vmatmul.mubr.bf16.gmra.mrb[0].mxu0 %v83
    %v119 = vpop.f32.mrb[0].mxu0
    %v120 = vadd.f32 0.0, %v119
    %v121 = vpop.f32.mrb[0].mxu0
    %v122 = vpop.f32.mrb[0].mxu0
    %v123 = vadd.f32 0.0, %v122
    %v124 = vpop.f32.mrb[0].mxu0
    %125 = vdwg.mxu0
    %v126 = vld [vmem:[#allocation5] sm:$0xf]
    %v127 = vld [vmem:[#allocation5 + $0x4] sm:$0xf]
    %v130 = vunpack.c.l.b16 %v126
    %v131 = vunpack.c.l.b16 %v127
    %v132 = vpack.c.b16 %v131, %v130
    %v134 = vsel %vm81, %v132, 0
    %136 = vmatprep.subr.bf16.mxu0 0
    %137 = vmatpush1.bf16.msra.mxu0 %v79
    %138 = vmatprep.subr.bf16.mxu0 0
    %139 = vmatpush1.bf16.msra.mxu0 0
    %140 = vmatprep.subr.bf16.mxu0 0
    %141 = vmatpush1.bf16.msra.mxu0 0
    %142 = vmatprep.subr.bf16.mxu0 0
    %143 = vmatpush1.bf16.msra.mxu0 0
    %144 = vmatprep.subr.bf16.mxu0 0
    %145 = vmatpush1.bf16.msra.mxu0 0
    %146 = vmatprep.subr.bf16.mxu0 0
    %147 = vmatpush1.bf16.msra.mxu0 0
    %148 = vmatprep.subr.bf16.mxu0 0
    %149 = vmatpush1.bf16.msra.mxu0 0
    %150 = vmatprep.subr.bf16.mxu0 0
    %151 = vmatpush1.bf16.msra.mxu0 0
    %152 = vmatprep.subr.bf16.mxu0 0
    %153 = vmatpush1.bf16.msra.mxu0 0
    %154 = vmatprep.subr.bf16.mxu0 0
    %155 = vmatpush1.bf16.msra.mxu0 0
    %156 = vmatprep.subr.bf16.mxu0 0
    %157 = vmatpush1.bf16.msra.mxu0 0
    %158 = vmatprep.subr.bf16.mxu0 0
    %159 = vmatpush1.bf16.msra.mxu0 0
    %160 = vmatprep.subr.bf16.mxu0 0
    %161 = vmatpush1.bf16.msra.mxu0 0
    %162 = vmatprep.subr.bf16.mxu0 0
    %163 = vmatpush1.bf16.msra.mxu0 0
    %164 = vmatprep.subr.bf16.mxu0 0
    %165 = vmatpush1.bf16.msra.mxu0 0
    %166 = vmatprep.subr.bf16.mxu0 0
    %167 = vmatpush1.bf16.msra.mxu0 0
    %168 = vmatprep.mubr.bf16.mxu0 0
    %169 = vmatmul.mubr.bf16.gmra.mrb[0].mxu0 %v134
    %v170 = vpop.f32.mrb[0].mxu0
    %v171 = vadd.f32 0.0, %v170
    %v172 = vpop.f32.mrb[0].mxu0
    %v173 = vpop.f32.mrb[0].mxu0
    %v174 = vadd.f32 0.0, %v173
    %v175 = vpop.f32.mrb[0].mxu0
    %176 = vdwg.mxu0
    %v177 = vld [vmem:[#allocation7] sm:$0xff]
    %v178 = vld [vmem:[%s4] sm:$0xff]
    %vm179 = vcmask 64512
    %v181 = vsel %vm179, %v171, 0
    %v184 = vsel %vm179, %v174, 0
    %186 = vmatprep.subr.mxu0 0.0
    %187 = vmatpush1.msra.mxu0 %v178
    %188 = vmatprep.subr.mxu0 0.0
    %189 = vmatpush1.msra.mxu0 0.0
    %190 = vmatprep.subr.mxu0 0.0
    %191 = vmatpush1.msra.mxu0 0.0
    %192 = vmatprep.subr.mxu0 0.0
    %193 = vmatpush1.msra.mxu0 0.0
    %194 = vmatprep.subr.mxu0 0.0
    %195 = vmatpush1.msra.mxu0 0.0
    %196 = vmatprep.subr.mxu0 0.0
    %197 = vmatpush1.msra.mxu0 0.0
    %198 = vmatprep.subr.mxu0 0.0
    %199 = vmatpush1.msra.mxu0 0.0
    %200 = vmatprep.subr.mxu0 0.0
    %201 = vmatpush1.msra.mxu0 0.0
    %202 = vmatprep.subr.mxu0 0.0
    %203 = vmatpush1.msra.mxu0 0.0
    %204 = vmatprep.subr.mxu0 0.0
    %205 = vmatpush1.msra.mxu0 0.0
    %206 = vmatprep.subr.mxu0 0.0
    %207 = vmatpush1.msra.mxu0 0.0
    %208 = vmatprep.subr.mxu0 0.0
    %209 = vmatpush1.msra.mxu0 0.0
    %210 = vmatprep.subr.mxu0 0.0
    %211 = vmatpush1.msra.mxu0 0.0
    %212 = vmatprep.subr.mxu0 0.0
    %213 = vmatpush1.msra.mxu0 0.0
    %214 = vmatprep.subr.mxu0 0.0
    %215 = vmatpush1.msra.mxu0 0.0
    %216 = vmatprep.subr.mxu0 0.0
    %217 = vmatpush1.msra.mxu0 0.0
    %218 = vmatprep.subr.mxu0 0.0
    %219 = vmatpush1.msra.mxu0 0.0
    %220 = vmatprep.subr.mxu0 0.0
    %221 = vmatpush1.msra.mxu0 0.0
    %222 = vmatprep.subr.mxu0 0.0
    %223 = vmatpush1.msra.mxu0 0.0
    %224 = vmatprep.subr.mxu0 0.0
    %225 = vmatpush1.msra.mxu0 0.0
    %226 = vmatprep.subr.mxu0 0.0
    %227 = vmatpush1.msra.mxu0 0.0
    %228 = vmatprep.subr.mxu0 0.0
    %229 = vmatpush1.msra.mxu0 0.0
    %230 = vmatprep.subr.mxu0 0.0
    %231 = vmatpush1.msra.mxu0 0.0
    %232 = vmatprep.subr.mxu0 0.0
    %233 = vmatpush1.msra.mxu0 0.0
    %234 = vmatprep.subr.mxu0 0.0
    %235 = vmatpush1.msra.mxu0 0.0
    %236 = vmatprep.subr.mxu0 0.0
    %237 = vmatpush1.msra.mxu0 0.0
    %238 = vmatprep.subr.mxu0 0.0
    %239 = vmatpush1.msra.mxu0 0.0
    %240 = vmatprep.subr.mxu0 0.0
    %241 = vmatpush1.msra.mxu0 0.0
    %242 = vmatprep.subr.mxu0 0.0
    %243 = vmatpush1.msra.mxu0 0.0
    %244 = vmatprep.subr.mxu0 0.0
    %245 = vmatpush1.msra.mxu0 0.0
    %246 = vmatprep.subr.mxu0 0.0
    %247 = vmatpush1.msra.mxu0 0.0
    %248 = vmatprep.subr.mxu0 0.0
    %249 = vmatpush1.msra.mxu0 0.0
    %250 = vmatprep.mubr.f32.mxu0 0.0
    %251 = vmatmul.mubr.f32.gmra.mrb[0].mxu0 %v181
    %v252 = vpop.f32.mrb[0].mxu0
    %v253 = vadd.f32 0.0, %v252
    %v254 = vpop.f32.mrb[0].mxu0
    %255 = vmatprep.mubr.f32.mxu0 0.0
    %256 = vmatmul.mubr.f32.gmra.mrb[0].mxu0 %v184
    %v257 = vpop.f32.mrb[0].mxu0
    %v258 = vadd.f32 0.0, %v257
    %v259 = vpop.f32.mrb[0].mxu0
    %260 = vdwg.mxu0
    %v262 = vsel %vm179, %v120, 0
    %v265 = vsel %vm179, %v123, 0
    %267 = vmatprep.subr.mxu0 0.0
    %268 = vmatpush1.msra.mxu0 %v177
    %269 = vmatprep.subr.mxu0 0.0
    %270 = vmatpush1.msra.mxu0 0.0
    %271 = vmatprep.subr.mxu0 0.0
    %272 = vmatpush1.msra.mxu0 0.0
    %273 = vmatprep.subr.mxu0 0.0
    %274 = vmatpush1.msra.mxu0 0.0
    %275 = vmatprep.subr.mxu0 0.0
    %276 = vmatpush1.msra.mxu0 0.0
    %277 = vmatprep.subr.mxu0 0.0
    %278 = vmatpush1.msra.mxu0 0.0
    %279 = vmatprep.subr.mxu0 0.0
    %280 = vmatpush1.msra.mxu0 0.0
    %281 = vmatprep.subr.mxu0 0.0
    %282 = vmatpush1.msra.mxu0 0.0
    %283 = vmatprep.subr.mxu0 0.0
    %284 = vmatpush1.msra.mxu0 0.0
    %285 = vmatprep.subr.mxu0 0.0
    %286 = vmatpush1.msra.mxu0 0.0
    %287 = vmatprep.subr.mxu0 0.0
    %288 = vmatpush1.msra.mxu0 0.0
    %289 = vmatprep.subr.mxu0 0.0
    %290 = vmatpush1.msra.mxu0 0.0
    %291 = vmatprep.subr.mxu0 0.0
    %292 = vmatpush1.msra.mxu0 0.0
    %293 = vmatprep.subr.mxu0 0.0
    %294 = vmatpush1.msra.mxu0 0.0
    %295 = vmatprep.subr.mxu0 0.0
    %296 = vmatpush1.msra.mxu0 0.0
    %297 = vmatprep.subr.mxu0 0.0
    %298 = vmatpush1.msra.mxu0 0.0
    %299 = vmatprep.subr.mxu0 0.0
    %300 = vmatpush1.msra.mxu0 0.0
    %301 = vmatprep.subr.mxu0 0.0
    %302 = vmatpush1.msra.mxu0 0.0
    %303 = vmatprep.subr.mxu0 0.0
    %304 = vmatpush1.msra.mxu0 0.0
    %305 = vmatprep.subr.mxu0 0.0
    %306 = vmatpush1.msra.mxu0 0.0
    %307 = vmatprep.subr.mxu0 0.0
    %308 = vmatpush1.msra.mxu0 0.0
    %309 = vmatprep.subr.mxu0 0.0
    %310 = vmatpush1.msra.mxu0 0.0
    %311 = vmatprep.subr.mxu0 0.0
    %312 = vmatpush1.msra.mxu0 0.0
    %313 = vmatprep.subr.mxu0 0.0
    %314 = vmatpush1.msra.mxu0 0.0
    %315 = vmatprep.subr.mxu0 0.0
    %316 = vmatpush1.msra.mxu0 0.0
    %317 = vmatprep.subr.mxu0 0.0
    %318 = vmatpush1.msra.mxu0 0.0
    %319 = vmatprep.subr.mxu0 0.0
    %320 = vmatpush1.msra.mxu0 0.0
    %321 = vmatprep.subr.mxu0 0.0
    %322 = vmatpush1.msra.mxu0 0.0
    %323 = vmatprep.subr.mxu0 0.0
    %324 = vmatpush1.msra.mxu0 0.0
    %325 = vmatprep.subr.mxu0 0.0
    %326 = vmatpush1.msra.mxu0 0.0
    %327 = vmatprep.subr.mxu0 0.0
    %328 = vmatpush1.msra.mxu0 0.0
    %329 = vmatprep.subr.mxu0 0.0
    %330 = vmatpush1.msra.mxu0 0.0
    %331 = vmatprep.mubr.f32.mxu0 0.0
    %332 = vmatmul.mubr.f32.gmra.mrb[0].mxu0 %v262
    %v333 = vpop.f32.mrb[0].mxu0
    %v334 = vadd.f32 %v253, %v333
    %v335 = vpop.f32.mrb[0].mxu0
    %336 = vmatprep.mubr.f32.mxu0 0.0
    %337 = vmatmul.mubr.f32.gmra.mrb[0].mxu0 %v265
    %v338 = vpop.f32.mrb[0].mxu0
    %v339 = vadd.f32 %v258, %v338
    %v340 = vpop.f32.mrb[0].mxu0
    %341 = vdwg.mxu0
    %s342 = scalar_lea.vmem [#allocation2], 8
    %v343 = vld [vmem:[%s342] sm:$0xf]
    %v344 = vld [vmem:[%s342 + $0x4] sm:$0xf]
    %v347 = vunpack.c.l.b16 %v343
    %v348 = vunpack.c.l.b16 %v344
    %v349 = vpack.c.b16 %v348, %v347
    %v351 = vsel %vm81, %v349, 0
    %353 = vmatprep.subr.bf16.mxu0 0
    %354 = vmatpush1.bf16.msra.mxu0 %v79
    %355 = vmatprep.subr.bf16.mxu0 0
    %356 = vmatpush1.bf16.msra.mxu0 0
    %357 = vmatprep.subr.bf16.mxu0 0
    %358 = vmatpush1.bf16.msra.mxu0 0
    %359 = vmatprep.subr.bf16.mxu0 0
    %360 = vmatpush1.bf16.msra.mxu0 0
    %361 = vmatprep.subr.bf16.mxu0 0
    %362 = vmatpush1.bf16.msra.mxu0 0
    %363 = vmatprep.subr.bf16.mxu0 0
    %364 = vmatpush1.bf16.msra.mxu0 0
    %365 = vmatprep.subr.bf16.mxu0 0
    %366 = vmatpush1.bf16.msra.mxu0 0
    %367 = vmatprep.subr.bf16.mxu0 0
    %368 = vmatpush1.bf16.msra.mxu0 0
    %369 = vmatprep.subr.bf16.mxu0 0
    %370 = vmatpush1.bf16.msra.mxu0 0
    %371 = vmatprep.subr.bf16.mxu0 0
    %372 = vmatpush1.bf16.msra.mxu0 0
    %373 = vmatprep.subr.bf16.mxu0 0
    %374 = vmatpush1.bf16.msra.mxu0 0
    %375 = vmatprep.subr.bf16.mxu0 0
    %376 = vmatpush1.bf16.msra.mxu0 0
    %377 = vmatprep.subr.bf16.mxu0 0
    %378 = vmatpush1.bf16.msra.mxu0 0
    %379 = vmatprep.subr.bf16.mxu0 0
    %380 = vmatpush1.bf16.msra.mxu0 0
    %381 = vmatprep.subr.bf16.mxu0 0
    %382 = vmatpush1.bf16.msra.mxu0 0
    %383 = vmatprep.subr.bf16.mxu0 0
    %384 = vmatpush1.bf16.msra.mxu0 0
    %385 = vmatprep.mubr.bf16.mxu0 0
    %386 = vmatmul.mubr.bf16.gmra.mrb[0].mxu0 %v351
    %v387 = vpop.f32.mrb[0].mxu0
    %v388 = vadd.f32 0.0, %v387
    %v389 = vpop.f32.mrb[0].mxu0
    %v390 = vpop.f32.mrb[0].mxu0
    %v391 = vadd.f32 0.0, %v390
    %v392 = vpop.f32.mrb[0].mxu0
    %393 = vdwg.mxu0
    %s394 = scalar_lea.vmem [#allocation5], 8
    %v395 = vld [vmem:[%s394] sm:$0xf]
    %v396 = vld [vmem:[%s394 + $0x4] sm:$0xf]
    %v399 = vunpack.c.l.b16 %v395
    %v400 = vunpack.c.l.b16 %v396
    %v401 = vpack.c.b16 %v400, %v399
    %v403 = vsel %vm81, %v401, 0
    %405 = vmatprep.subr.bf16.mxu0 0
    %406 = vmatpush1.bf16.msra.mxu0 %v79
    %407 = vmatprep.subr.bf16.mxu0 0
    %408 = vmatpush1.bf16.msra.mxu0 0
    %409 = vmatprep.subr.bf16.mxu0 0
    %410 = vmatpush1.bf16.msra.mxu0 0
    %411 = vmatprep.subr.bf16.mxu0 0
    %412 = vmatpush1.bf16.msra.mxu0 0
    %413 = vmatprep.subr.bf16.mxu0 0
    %414 = vmatpush1.bf16.msra.mxu0 0
    %415 = vmatprep.subr.bf16.mxu0 0
    %416 = vmatpush1.bf16.msra.mxu0 0
    %417 = vmatprep.subr.bf16.mxu0 0
    %418 = vmatpush1.bf16.msra.mxu0 0
    %419 = vmatprep.subr.bf16.mxu0 0
    %420 = vmatpush1.bf16.msra.mxu0 0
    %421 = vmatprep.subr.bf16.mxu0 0
    %422 = vmatpush1.bf16.msra.mxu0 0
    %423 = vmatprep.subr.bf16.mxu0 0
    %424 = vmatpush1.bf16.msra.mxu0 0
    %425 = vmatprep.subr.bf16.mxu0 0
    %426 = vmatpush1.bf16.msra.mxu0 0
    %427 = vmatprep.subr.bf16.mxu0 0
    %428 = vmatpush1.bf16.msra.mxu0 0
    %429 = vmatprep.subr.bf16.mxu0 0
    %430 = vmatpush1.bf16.msra.mxu0 0
    %431 = vmatprep.subr.bf16.mxu0 0
    %432 = vmatpush1.bf16.msra.mxu0 0
    %433 = vmatprep.subr.bf16.mxu0 0
    %434 = vmatpush1.bf16.msra.mxu0 0
    %435 = vmatprep.subr.bf16.mxu0 0
    %436 = vmatpush1.bf16.msra.mxu0 0
    %437 = vmatprep.mubr.bf16.mxu0 0
    %438 = vmatmul.mubr.bf16.gmra.mrb[0].mxu0 %v403
    %v439 = vpop.f32.mrb[0].mxu0
    %v440 = vadd.f32 0.0, %v439
    %v441 = vpop.f32.mrb[0].mxu0
    %v442 = vpop.f32.mrb[0].mxu0
    %v443 = vadd.f32 0.0, %v442
    %v444 = vpop.f32.mrb[0].mxu0
    %445 = vdwg.mxu0
    %s446 = scalar_lea.vmem [#allocation7], 8
    %v447 = vld [vmem:[%s446] sm:$0xff]
    %v449 = vsel %vm179, %v388, 0
    %v452 = vsel %vm179, %v391, 0
    %454 = vmatprep.subr.mxu0 0.0
    %455 = vmatpush1.msra.mxu0 %v447
    %456 = vmatprep.subr.mxu0 0.0
    %457 = vmatpush1.msra.mxu0 0.0
    %458 = vmatprep.subr.mxu0 0.0
    %459 = vmatpush1.msra.mxu0 0.0
    %460 = vmatprep.subr.mxu0 0.0
    %461 = vmatpush1.msra.mxu0 0.0
    %462 = vmatprep.subr.mxu0 0.0
    %463 = vmatpush1.msra.mxu0 0.0
    %464 = vmatprep.subr.mxu0 0.0
    %465 = vmatpush1.msra.mxu0 0.0
    %466 = vmatprep.subr.mxu0 0.0
    %467 = vmatpush1.msra.mxu0 0.0
    %468 = vmatprep.subr.mxu0 0.0
    %469 = vmatpush1.msra.mxu0 0.0
    %470 = vmatprep.subr.mxu0 0.0
    %471 = vmatpush1.msra.mxu0 0.0
    %472 = vmatprep.subr.mxu0 0.0
    %473 = vmatpush1.msra.mxu0 0.0
    %474 = vmatprep.subr.mxu0 0.0
    %475 = vmatpush1.msra.mxu0 0.0
    %476 = vmatprep.subr.mxu0 0.0
    %477 = vmatpush1.msra.mxu0 0.0
    %478 = vmatprep.subr.mxu0 0.0
    %479 = vmatpush1.msra.mxu0 0.0
    %480 = vmatprep.subr.mxu0 0.0
    %481 = vmatpush1.msra.mxu0 0.0
    %482 = vmatprep.subr.mxu0 0.0
    %483 = vmatpush1.msra.mxu0 0.0
    %484 = vmatprep.subr.mxu0 0.0
    %485 = vmatpush1.msra.mxu0 0.0
    %486 = vmatprep.subr.mxu0 0.0
    %487 = vmatpush1.msra.mxu0 0.0
    %488 = vmatprep.subr.mxu0 0.0
    %489 = vmatpush1.msra.mxu0 0.0
    %490 = vmatprep.subr.mxu0 0.0
    %491 = vmatpush1.msra.mxu0 0.0
    %492 = vmatprep.subr.mxu0 0.0
    %493 = vmatpush1.msra.mxu0 0.0
    %494 = vmatprep.subr.mxu0 0.0
    %495 = vmatpush1.msra.mxu0 0.0
    %496 = vmatprep.subr.mxu0 0.0
    %497 = vmatpush1.msra.mxu0 0.0
    %498 = vmatprep.subr.mxu0 0.0
    %499 = vmatpush1.msra.mxu0 0.0
    %500 = vmatprep.subr.mxu0 0.0
    %501 = vmatpush1.msra.mxu0 0.0
    %502 = vmatprep.subr.mxu0 0.0
    %503 = vmatpush1.msra.mxu0 0.0
    %504 = vmatprep.subr.mxu0 0.0
    %505 = vmatpush1.msra.mxu0 0.0
    %506 = vmatprep.subr.mxu0 0.0
    %507 = vmatpush1.msra.mxu0 0.0
    %508 = vmatprep.subr.mxu0 0.0
    %509 = vmatpush1.msra.mxu0 0.0
    %510 = vmatprep.subr.mxu0 0.0
    %511 = vmatpush1.msra.mxu0 0.0
    %512 = vmatprep.subr.mxu0 0.0
    %513 = vmatpush1.msra.mxu0 0.0
    %514 = vmatprep.subr.mxu0 0.0
    %515 = vmatpush1.msra.mxu0 0.0
    %516 = vmatprep.subr.mxu0 0.0
    %517 = vmatpush1.msra.mxu0 0.0
    %518 = vmatprep.mubr.f32.mxu0 0.0
    %519 = vmatmul.mubr.f32.gmra.mrb[0].mxu0 %v449
    %v520 = vpop.f32.mrb[0].mxu0
    %v521 = vadd.f32 0.0, %v520
    %v522 = vpop.f32.mrb[0].mxu0
    %523 = vmatprep.mubr.f32.mxu0 0.0
    %524 = vmatmul.mubr.f32.gmra.mrb[0].mxu0 %v452
    %v525 = vpop.f32.mrb[0].mxu0
    %v526 = vadd.f32 0.0, %v525
    %v527 = vpop.f32.mrb[0].mxu0
    %528 = vdwg.mxu0
    %v529 = vadd.f32 %v334, %v521
    %v530 = vadd.f32 %v339, %v526
    %s531 = scalar_lea.vmem %s4, 8
    %v532 = vld [vmem:[%s531] sm:$0xff]
    %v534 = vsel %vm179, %v440, 0
    %v537 = vsel %vm179, %v443, 0
    %539 = vmatprep.subr.mxu0 0.0
    %540 = vmatpush1.msra.mxu0 %v532
    %541 = vmatprep.subr.mxu0 0.0
    %542 = vmatpush1.msra.mxu0 0.0
    %543 = vmatprep.subr.mxu0 0.0
    %544 = vmatpush1.msra.mxu0 0.0
    %545 = vmatprep.subr.mxu0 0.0
    %546 = vmatpush1.msra.mxu0 0.0
    %547 = vmatprep.subr.mxu0 0.0
    %548 = vmatpush1.msra.mxu0 0.0
    %549 = vmatprep.subr.mxu0 0.0
    %550 = vmatpush1.msra.mxu0 0.0
    %551 = vmatprep.subr.mxu0 0.0
    %552 = vmatpush1.msra.mxu0 0.0
    %553 = vmatprep.subr.mxu0 0.0
    %554 = vmatpush1.msra.mxu0 0.0
    %555 = vmatprep.subr.mxu0 0.0
    %556 = vmatpush1.msra.mxu0 0.0
    %557 = vmatprep.subr.mxu0 0.0
    %558 = vmatpush1.msra.mxu0 0.0
    %559 = vmatprep.subr.mxu0 0.0
    %560 = vmatpush1.msra.mxu0 0.0
    %561 = vmatprep.subr.mxu0 0.0
    %562 = vmatpush1.msra.mxu0 0.0
    %563 = vmatprep.subr.mxu0 0.0
    %564 = vmatpush1.msra.mxu0 0.0
    %565 = vmatprep.subr.mxu0 0.0
    %566 = vmatpush1.msra.mxu0 0.0
    %567 = vmatprep.subr.mxu0 0.0
    %568 = vmatpush1.msra.mxu0 0.0
    %569 = vmatprep.subr.mxu0 0.0
    %570 = vmatpush1.msra.mxu0 0.0
    %571 = vmatprep.subr.mxu0 0.0
    %572 = vmatpush1.msra.mxu0 0.0
    %573 = vmatprep.subr.mxu0 0.0
    %574 = vmatpush1.msra.mxu0 0.0
    %575 = vmatprep.subr.mxu0 0.0
    %576 = vmatpush1.msra.mxu0 0.0
    %577 = vmatprep.subr.mxu0 0.0
    %578 = vmatpush1.msra.mxu0 0.0
    %579 = vmatprep.subr.mxu0 0.0
    %580 = vmatpush1.msra.mxu0 0.0
    %581 = vmatprep.subr.mxu0 0.0
    %582 = vmatpush1.msra.mxu0 0.0
    %583 = vmatprep.subr.mxu0 0.0
    %584 = vmatpush1.msra.mxu0 0.0
    %585 = vmatprep.subr.mxu0 0.0
    %586 = vmatpush1.msra.mxu0 0.0
    %587 = vmatprep.subr.mxu0 0.0
    %588 = vmatpush1.msra.mxu0 0.0
    %589 = vmatprep.subr.mxu0 0.0
    %590 = vmatpush1.msra.mxu0 0.0
    %591 = vmatprep.subr.mxu0 0.0
    %592 = vmatpush1.msra.mxu0 0.0
    %593 = vmatprep.subr.mxu0 0.0
    %594 = vmatpush1.msra.mxu0 0.0
    %595 = vmatprep.subr.mxu0 0.0
    %596 = vmatpush1.msra.mxu0 0.0
    %597 = vmatprep.subr.mxu0 0.0
    %598 = vmatpush1.msra.mxu0 0.0
    %599 = vmatprep.subr.mxu0 0.0
    %600 = vmatpush1.msra.mxu0 0.0
    %601 = vmatprep.subr.mxu0 0.0
    %602 = vmatpush1.msra.mxu0 0.0
    %603 = vmatprep.mubr.f32.mxu0 0.0
    %604 = vmatmul.mubr.f32.gmra.mrb[0].mxu0 %v534
    %v605 = vpop.f32.mrb[0].mxu0
    %v606 = vadd.f32 0.0, %v605
    %v607 = vpop.f32.mrb[0].mxu0
    %608 = vmatprep.mubr.f32.mxu0 0.0
    %609 = vmatmul.mubr.f32.gmra.mrb[0].mxu0 %v537
    %v610 = vpop.f32.mrb[0].mxu0
    %v611 = vadd.f32 0.0, %v610
    %v612 = vpop.f32.mrb[0].mxu0
    %613 = vdwg.mxu0
    %v614 = vadd.f32 %v529, %v606
    %v615 = vadd.f32 %v530, %v611
    %s616 = scalar_lea.vmem [#allocation2], 16
    %v617 = vld [vmem:[%s616] sm:$0xf]
    %v618 = vld [vmem:[%s616 + $0x4] sm:$0xf]
    %v621 = vunpack.c.l.b16 %v617
    %v622 = vunpack.c.l.b16 %v618
    %v623 = vpack.c.b16 %v622, %v621
    %v625 = vsel %vm81, %v623, 0
    %627 = vmatprep.subr.bf16.mxu0 0
    %628 = vmatpush1.bf16.msra.mxu0 %v79
    %629 = vmatprep.subr.bf16.mxu0 0
    %630 = vmatpush1.bf16.msra.mxu0 0
    %631 = vmatprep.subr.bf16.mxu0 0
    %632 = vmatpush1.bf16.msra.mxu0 0
    %633 = vmatprep.subr.bf16.mxu0 0
    %634 = vmatpush1.bf16.msra.mxu0 0
    %635 = vmatprep.subr.bf16.mxu0 0
    %636 = vmatpush1.bf16.msra.mxu0 0
    %637 = vmatprep.subr.bf16.mxu0 0
    %638 = vmatpush1.bf16.msra.mxu0 0
    %639 = vmatprep.subr.bf16.mxu0 0
    %640 = vmatpush1.bf16.msra.mxu0 0
    %641 = vmatprep.subr.bf16.mxu0 0
    %642 = vmatpush1.bf16.msra.mxu0 0
    %643 = vmatprep.subr.bf16.mxu0 0
    %644 = vmatpush1.bf16.msra.mxu0 0
    %645 = vmatprep.subr.bf16.mxu0 0
    %646 = vmatpush1.bf16.msra.mxu0 0
    %647 = vmatprep.subr.bf16.mxu0 0
    %648 = vmatpush1.bf16.msra.mxu0 0
    %649 = vmatprep.subr.bf16.mxu0 0
    %650 = vmatpush1.bf16.msra.mxu0 0
    %651 = vmatprep.subr.bf16.mxu0 0
    %652 = vmatpush1.bf16.msra.mxu0 0
    %653 = vmatprep.subr.bf16.mxu0 0
    %654 = vmatpush1.bf16.msra.mxu0 0
    %655 = vmatprep.subr.bf16.mxu0 0
    %656 = vmatpush1.bf16.msra.mxu0 0
    %657 = vmatprep.subr.bf16.mxu0 0
    %658 = vmatpush1.bf16.msra.mxu0 0
    %659 = vmatprep.mubr.bf16.mxu0 0
    %660 = vmatmul.mubr.bf16.gmra.mrb[0].mxu0 %v625
    %v661 = vpop.f32.mrb[0].mxu0
    %v662 = vadd.f32 0.0, %v661
    %v663 = vpop.f32.mrb[0].mxu0
    %v664 = vpop.f32.mrb[0].mxu0
    %v665 = vadd.f32 0.0, %v664
    %v666 = vpop.f32.mrb[0].mxu0
    %667 = vdwg.mxu0
    %s668 = scalar_lea.vmem [#allocation5], 16
    %v669 = vld [vmem:[%s668] sm:$0xf]
    %v670 = vld [vmem:[%s668 + $0x4] sm:$0xf]
    %v673 = vunpack.c.l.b16 %v669
    %v674 = vunpack.c.l.b16 %v670
    %v675 = vpack.c.b16 %v674, %v673
    %v677 = vsel %vm81, %v675, 0
    %679 = vmatprep.subr.bf16.mxu0 0
    %680 = vmatpush1.bf16.msra.mxu0 %v79
    %681 = vmatprep.subr.bf16.mxu0 0
    %682 = vmatpush1.bf16.msra.mxu0 0
    %683 = vmatprep.subr.bf16.mxu0 0
    %684 = vmatpush1.bf16.msra.mxu0 0
    %685 = vmatprep.subr.bf16.mxu0 0
    %686 = vmatpush1.bf16.msra.mxu0 0
    %687 = vmatprep.subr.bf16.mxu0 0
    %688 = vmatpush1.bf16.msra.mxu0 0
    %689 = vmatprep.subr.bf16.mxu0 0
    %690 = vmatpush1.bf16.msra.mxu0 0
    %691 = vmatprep.subr.bf16.mxu0 0
    %692 = vmatpush1.bf16.msra.mxu0 0
    %693 = vmatprep.subr.bf16.mxu0 0
    %694 = vmatpush1.bf16.msra.mxu0 0
    %695 = vmatprep.subr.bf16.mxu0 0
    %696 = vmatpush1.bf16.msra.mxu0 0
    %697 = vmatprep.subr.bf16.mxu0 0
    %698 = vmatpush1.bf16.msra.mxu0 0
    %699 = vmatprep.subr.bf16.mxu0 0
    %700 = vmatpush1.bf16.msra.mxu0 0
    %701 = vmatprep.subr.bf16.mxu0 0
    %702 = vmatpush1.bf16.msra.mxu0 0
    %703 = vmatprep.subr.bf16.mxu0 0
    %704 = vmatpush1.bf16.msra.mxu0 0
    %705 = vmatprep.subr.bf16.mxu0 0
    %706 = vmatpush1.bf16.msra.mxu0 0
    %707 = vmatprep.subr.bf16.mxu0 0
    %708 = vmatpush1.bf16.msra.mxu0 0
    %709 = vmatprep.subr.bf16.mxu0 0
    %710 = vmatpush1.bf16.msra.mxu0 0
    %711 = vmatprep.mubr.bf16.mxu0 0
    %712 = vmatmul.mubr.bf16.gmra.mrb[0].mxu0 %v677
    %v713 = vpop.f32.mrb[0].mxu0
    %v714 = vadd.f32 0.0, %v713
    %v715 = vpop.f32.mrb[0].mxu0
    %v716 = vpop.f32.mrb[0].mxu0
    %v717 = vadd.f32 0.0, %v716
    %v718 = vpop.f32.mrb[0].mxu0
    %719 = vdwg.mxu0
    %s720 = scalar_lea.vmem [#allocation7], 16
    %v721 = vld [vmem:[%s720] sm:$0xff]
    %v723 = vsel %vm179, %v662, 0
    %v726 = vsel %vm179, %v665, 0
    %728 = vmatprep.subr.mxu0 0.0
    %729 = vmatpush1.msra.mxu0 %v721
    %730 = vmatprep.subr.mxu0 0.0
    %731 = vmatpush1.msra.mxu0 0.0
    %732 = vmatprep.subr.mxu0 0.0
    %733 = vmatpush1.msra.mxu0 0.0
    %734 = vmatprep.subr.mxu0 0.0
    %735 = vmatpush1.msra.mxu0 0.0
    %736 = vmatprep.subr.mxu0 0.0
    %737 = vmatpush1.msra.mxu0 0.0
    %738 = vmatprep.subr.mxu0 0.0
    %739 = vmatpush1.msra.mxu0 0.0
    %740 = vmatprep.subr.mxu0 0.0
    %741 = vmatpush1.msra.mxu0 0.0
    %742 = vmatprep.subr.mxu0 0.0
    %743 = vmatpush1.msra.mxu0 0.0
    %744 = vmatprep.subr.mxu0 0.0
    %745 = vmatpush1.msra.mxu0 0.0
    %746 = vmatprep.subr.mxu0 0.0
    %747 = vmatpush1.msra.mxu0 0.0
    %748 = vmatprep.subr.mxu0 0.0
    %749 = vmatpush1.msra.mxu0 0.0
    %750 = vmatprep.subr.mxu0 0.0
    %751 = vmatpush1.msra.mxu0 0.0
    %752 = vmatprep.subr.mxu0 0.0
    %753 = vmatpush1.msra.mxu0 0.0
    %754 = vmatprep.subr.mxu0 0.0
    %755 = vmatpush1.msra.mxu0 0.0
    %756 = vmatprep.subr.mxu0 0.0
    %757 = vmatpush1.msra.mxu0 0.0
    %758 = vmatprep.subr.mxu0 0.0
    %759 = vmatpush1.msra.mxu0 0.0
    %760 = vmatprep.subr.mxu0 0.0
    %761 = vmatpush1.msra.mxu0 0.0
    %762 = vmatprep.subr.mxu0 0.0
    %763 = vmatpush1.msra.mxu0 0.0
    %764 = vmatprep.subr.mxu0 0.0
    %765 = vmatpush1.msra.mxu0 0.0
    %766 = vmatprep.subr.mxu0 0.0
    %767 = vmatpush1.msra.mxu0 0.0
    %768 = vmatprep.subr.mxu0 0.0
    %769 = vmatpush1.msra.mxu0 0.0
    %770 = vmatprep.subr.mxu0 0.0
    %771 = vmatpush1.msra.mxu0 0.0
    %772 = vmatprep.subr.mxu0 0.0
    %773 = vmatpush1.msra.mxu0 0.0
    %774 = vmatprep.subr.mxu0 0.0
    %775 = vmatpush1.msra.mxu0 0.0
    %776 = vmatprep.subr.mxu0 0.0
    %777 = vmatpush1.msra.mxu0 0.0
    %778 = vmatprep.subr.mxu0 0.0
    %779 = vmatpush1.msra.mxu0 0.0
    %780 = vmatprep.subr.mxu0 0.0
    %781 = vmatpush1.msra.mxu0 0.0
    %782 = vmatprep.subr.mxu0 0.0
    %783 = vmatpush1.msra.mxu0 0.0
    %784 = vmatprep.subr.mxu0 0.0
    %785 = vmatpush1.msra.mxu0 0.0
    %786 = vmatprep.subr.mxu0 0.0
    %787 = vmatpush1.msra.mxu0 0.0
    %788 = vmatprep.subr.mxu0 0.0
    %789 = vmatpush1.msra.mxu0 0.0
    %790 = vmatprep.subr.mxu0 0.0
    %791 = vmatpush1.msra.mxu0 0.0
    %792 = vmatprep.mubr.f32.mxu0 0.0
    %793 = vmatmul.mubr.f32.gmra.mrb[0].mxu0 %v723
    %v794 = vpop.f32.mrb[0].mxu0
    %v795 = vadd.f32 0.0, %v794
    %v796 = vpop.f32.mrb[0].mxu0
    %797 = vmatprep.mubr.f32.mxu0 0.0
    %798 = vmatmul.mubr.f32.gmra.mrb[0].mxu0 %v726
    %v799 = vpop.f32.mrb[0].mxu0
    %v800 = vadd.f32 0.0, %v799
    %v801 = vpop.f32.mrb[0].mxu0
    %802 = vdwg.mxu0
    %v803 = vadd.f32 %v614, %v795
    %v804 = vadd.f32 %v615, %v800
    %s805 = scalar_lea.vmem %s4, 16
    %v806 = vld [vmem:[%s805] sm:$0xff]
    %v808 = vsel %vm179, %v714, 0
    %v811 = vsel %vm179, %v717, 0
    %813 = vmatprep.subr.mxu0 0.0
    %814 = vmatpush1.msra.mxu0 %v806
    %815 = vmatprep.subr.mxu0 0.0
    %816 = vmatpush1.msra.mxu0 0.0
    %817 = vmatprep.subr.mxu0 0.0
    %818 = vmatpush1.msra.mxu0 0.0
    %819 = vmatprep.subr.mxu0 0.0
    %820 = vmatpush1.msra.mxu0 0.0
    %821 = vmatprep.subr.mxu0 0.0
    %822 = vmatpush1.msra.mxu0 0.0
    %823 = vmatprep.subr.mxu0 0.0
    %824 = vmatpush1.msra.mxu0 0.0
    %825 = vmatprep.subr.mxu0 0.0
    %826 = vmatpush1.msra.mxu0 0.0
    %827 = vmatprep.subr.mxu0 0.0
    %828 = vmatpush1.msra.mxu0 0.0
    %829 = vmatprep.subr.mxu0 0.0
    %830 = vmatpush1.msra.mxu0 0.0
    %831 = vmatprep.subr.mxu0 0.0
    %832 = vmatpush1.msra.mxu0 0.0
    %833 = vmatprep.subr.mxu0 0.0
    %834 = vmatpush1.msra.mxu0 0.0
    %835 = vmatprep.subr.mxu0 0.0
    %836 = vmatpush1.msra.mxu0 0.0
    %837 = vmatprep.subr.mxu0 0.0
    %838 = vmatpush1.msra.mxu0 0.0
    %839 = vmatprep.subr.mxu0 0.0
    %840 = vmatpush1.msra.mxu0 0.0
    %841 = vmatprep.subr.mxu0 0.0
    %842 = vmatpush1.msra.mxu0 0.0
    %843 = vmatprep.subr.mxu0 0.0
    %844 = vmatpush1.msra.mxu0 0.0
    %845 = vmatprep.subr.mxu0 0.0
    %846 = vmatpush1.msra.mxu0 0.0
    %847 = vmatprep.subr.mxu0 0.0
    %848 = vmatpush1.msra.mxu0 0.0
    %849 = vmatprep.subr.mxu0 0.0
    %850 = vmatpush1.msra.mxu0 0.0
    %851 = vmatprep.subr.mxu0 0.0
    %852 = vmatpush1.msra.mxu0 0.0
    %853 = vmatprep.subr.mxu0 0.0
    %854 = vmatpush1.msra.mxu0 0.0
    %855 = vmatprep.subr.mxu0 0.0
    %856 = vmatpush1.msra.mxu0 0.0
    %857 = vmatprep.subr.mxu0 0.0
    %858 = vmatpush1.msra.mxu0 0.0
    %859 = vmatprep.subr.mxu0 0.0
    %860 = vmatpush1.msra.mxu0 0.0
    %861 = vmatprep.subr.mxu0 0.0
    %862 = vmatpush1.msra.mxu0 0.0
    %863 = vmatprep.subr.mxu0 0.0
    %864 = vmatpush1.msra.mxu0 0.0
    %865 = vmatprep.subr.mxu0 0.0
    %866 = vmatpush1.msra.mxu0 0.0
    %867 = vmatprep.subr.mxu0 0.0
    %868 = vmatpush1.msra.mxu0 0.0
    %869 = vmatprep.subr.mxu0 0.0
    %870 = vmatpush1.msra.mxu0 0.0
    %871 = vmatprep.subr.mxu0 0.0
    %872 = vmatpush1.msra.mxu0 0.0
    %873 = vmatprep.subr.mxu0 0.0
    %874 = vmatpush1.msra.mxu0 0.0
    %875 = vmatprep.subr.mxu0 0.0
    %876 = vmatpush1.msra.mxu0 0.0
    %877 = vmatprep.mubr.f32.mxu0 0.0
    %878 = vmatmul.mubr.f32.gmra.mrb[0].mxu0 %v808
    %v879 = vpop.f32.mrb[0].mxu0
    %v880 = vadd.f32 0.0, %v879
    %v881 = vpop.f32.mrb[0].mxu0
    %882 = vmatprep.mubr.f32.mxu0 0.0
    %883 = vmatmul.mubr.f32.gmra.mrb[0].mxu0 %v811
    %v884 = vpop.f32.mrb[0].mxu0
    %v885 = vadd.f32 0.0, %v884
    %v886 = vpop.f32.mrb[0].mxu0
    %887 = vdwg.mxu0
    %v888 = vadd.f32 %v803, %v880
    %v889 = vadd.f32 %v804, %v885
    %v890 = vld [vmem:[%s5] sm:$0x1]
    %v892 = vlaneseq
    %v893 = vshrl.u32 %v892, 7
    %v894 = vsub.s32 0, %v893
    %v895 = vrot.slane %v890, %v894
    %v897 = vadd.f32 %v888, %v895
    %v898 = vadd.f32 %v889, %v895
    %899 = vst.msk [vmem:[#allocation8] sm:$0xff] %vm81, %v897
    %900 = vst.msk [vmem:[#allocation8 + $0x8] sm:$0xff] %vm81, %v898
    // Predicated region
    $region38: #{tpu_custom_call.1} parent=1 // pred_check
      _
    $region39: #{tpu_custom_call.1} parent=1 // pred_check_branch
      %902 = sbr.rel (0) target = $region41
    $region40: #{tpu_custom_call.1} parent=1 // pred_region
      %s904 = ssub.s32 256, 256
      %905 = vsyncadd [#allocation4], %s904
      %s906 = sshll.u32 [#allocation8], 4
      %s907 = int_to_ptr.vmem [resolvable:$true] %s906
      %912 = dma.vmem_to_hbm [thread:$0]  %s907, 256, %s6, [#allocation4], 128, 128, 8
    $region41: #{tpu_custom_call.1} parent=1 // pred_fallthru
      _
    // Predicated region
    $region42: #{tpu_custom_call.1} parent=1 // pred_check
      _
    $region43: #{tpu_custom_call.1} parent=1 // pred_check_branch
      %914 = sbr.rel (0) target = $region45
    $region44: #{tpu_custom_call.1} parent=1 // pred_region
      %915 = dma.done [#allocation4], 256
    $region45: #{tpu_custom_call.1} parent=1 // pred_fallthru
      _
    %916 = vsyncpa [#allocation3], 1
    %917 = vsyncpa [#allocation6], 1
    %918 = vsyncpa [#allocation4], 1

</llo_original>
